<compile_context>
chip_gen: v7x
topology: tpu7x:2x2x1
jax: 0.10.0
libtpu: 0.0.40
codegen_flags: <defaults>
</compile_context>

<pallas_src>
import numpy as np
import jax
import jax.numpy as jnp
from jax.experimental import pallas as pl
from jax.experimental.pallas import tpu as pltpu


# ----------------------------------------------------------------------------
# Fused Pallas kernel: per-subject Conv1d (bias=False) + folded BN affine
# ----------------------------------------------------------------------------
def _subject_conv_bn_call(x, w_folded, shift, subj_idx, *, kernel_size, stride, pad):
    """x:        (N, C_in, L_in) f32   (PyTorch channels-first layout)
       w_folded: (S, C_out, K*C_in)    conv weights with BN scale folded in,
                                       column (k*C_in + c) == W_pt[o, c, k] * bn_scale[o]
       shift:    (C_out, 1)            BN shift = beta - running_mean * scale
       subj_idx: (N,) int32            per-sample subject index into w_folded
       returns:  (N, C_out, L_out)
    """
    N, C_in, L_in = x.shape
    S, C_out, KC = w_folded.shape
    K = kernel_size
    assert KC == K * C_in
    L_pad = L_in + 2 * pad
    L_full = L_pad - K + 1                      # stride-1 conv output length
    L_out = (L_pad - K) // stride + 1           # strided conv output length
    assert L_full >= 1 and L_out >= 1
    use_sel = stride > 1

    def kernel(subj_ref, x_ref, w_ref, shift_ref, *rest):
        del subj_ref  # consumed by the weight index_map only
        if use_sel:
            sel_ref, o_ref, xpad_ref, slab_ref = rest
        else:
            o_ref, xpad_ref, slab_ref = rest
            sel_ref = None

        # --- stage the (C_in, L_in) tile into a zero-padded VMEM scratch -----
        if pad > 0:
            xpad_ref[...] = jnp.zeros_like(xpad_ref)
        xpad_ref[:, pl.ds(pad, L_in)] = x_ref[0].astype(jnp.float32)

        # --- im2col with contiguous lane slices only (no strided reads) -----
        # slab[k*C_in + c, l] = x_padded[c, l + k];  K is small & static -> unrolled
        for k in range(K):
            slab_ref[pl.ds(k * C_in, C_in), :] = xpad_ref[:, pl.ds(k, L_full)]

        # --- one MXU matmul: stride-1 conv over the padded input ------------
        out = jnp.dot(w_ref[0], slab_ref[...],
                      preferred_element_type=jnp.float32)        # (C_out, L_full)

        # --- downsample (stride) via a constant 0/1 selection matmul --------
        if use_sel:
            out = jnp.dot(out, sel_ref[...],
                          preferred_element_type=jnp.float32)    # (C_out, L_out)

        # --- BatchNorm: scale already folded into the weights ---------------
        out = out + shift_ref[...]
        o_ref[0] = out.astype(o_ref.dtype)

    in_specs = [
        pl.BlockSpec((1, C_in, L_in), lambda n, subj: (n, 0, 0)),
        pl.BlockSpec((1, C_out, KC), lambda n, subj: (subj[n], 0, 0)),
        pl.BlockSpec((C_out, 1), lambda n, subj: (0, 0)),
    ]
    operands = [subj_idx, x, w_folded, shift]
    if use_sel:
        # Constant stride-selection matrix: sel[l_full, l_out] = (l_full == l_out*stride)
        sel_np = np.zeros((L_full, L_out), np.float32)
        sel_np[np.arange(L_out) * stride, np.arange(L_out)] = 1.0
        in_specs.append(pl.BlockSpec((L_full, L_out), lambda n, subj: (0, 0)))
        operands.append(jnp.asarray(sel_np))

    grid_spec = pltpu.PrefetchScalarGridSpec(
        num_scalar_prefetch=1,                  # subj_idx -> SMEM, feeds index_maps
        grid=(N,),
        in_specs=in_specs,
        out_specs=pl.BlockSpec((1, C_out, L_out), lambda n, subj: (n, 0, 0)),
        scratch_shapes=[
            pltpu.VMEM((C_in, L_pad), jnp.float32),   # zero-padded input
            pltpu.VMEM((KC, L_full), jnp.float32),    # im2col slab
        ],
    )
    return pl.pallas_call(
        kernel,
        out_shape=jax.ShapeDtypeStruct((N, C_out, L_out), x.dtype),
        grid_spec=grid_spec,
        compiler_params=pltpu.CompilerParams(dimension_semantics=("parallel",)),
    )(*operands)


# ----------------------------------------------------------------------------
# Parameters (mirroring the PyTorch module) and BN folding
# ----------------------------------------------------------------------------
def init_subject_module_params(key, subject_ids, n_filters_in, n_filters_out, kernel_size):
    S = len(subject_ids)
    kw, kg, kb, km, kv = jax.random.split(key, 5)
    fan_in = n_filters_in * kernel_size
    conv_w = (jax.random.normal(
        kw, (S, n_filters_out, n_filters_in, kernel_size), jnp.float32)
        / np.sqrt(fan_in))                                  # PyTorch (C_out, C_in, K) per subject
    bn = {
        "gamma": 1.0 + 0.1 * jax.random.normal(kg, (n_filters_out,), jnp.float32),
        "beta": 0.1 * jax.random.normal(kb, (n_filters_out,), jnp.float32),
        "running_mean": 0.1 * jax.random.normal(km, (n_filters_out,), jnp.float32),
        "running_var": 1.0 + 0.1 * jax.random.uniform(kv, (n_filters_out,), jnp.float32),
        "eps": 1e-5,
    }
    return {"conv_w": conv_w, "bn": bn, "subject_ids": list(subject_ids)}


def prepare_kernel_params(params):
    """Fold eval-mode BatchNorm into the conv weights; lay them out for im2col."""
    # TODO(synk): BatchNorm1d training-mode (batch statistics + running-stat
    # updates) is not implemented; eval-mode running stats are folded here.
    w = params["conv_w"]                                    # (S, C_out, C_in, K)
    bn = params["bn"]
    scale = bn["gamma"] / jnp.sqrt(bn["running_var"] + bn["eps"])
    shift = bn["beta"] - bn["running_mean"] * scale
    S, C_out, C_in, K = w.shape
    w_folded = jnp.transpose(w, (0, 1, 3, 2)).reshape(S, C_out, K * C_in)
    w_folded = w_folded * scale[None, :, None]
    return {"w_folded": w_folded, "shift": shift.reshape(C_out, 1)}


def subject_module_forward(x, subj_id, params, kernel_params, *,
                           kernel_size, downsample, padding):
    """Matches subject_module.forward (eval mode); subj_id scalar or per-sample list."""
    id_to_idx = {sid: i for i, sid in enumerate(params["subject_ids"])}
    n = x.shape[0]
    if isinstance(subj_id, (list, tuple)):
        # PyTorch list branch: one conv per sample then stack == batched per-sample dispatch.
        assert len(subj_id) == n
        idx = np.asarray([id_to_idx[s] for s in subj_id], dtype=np.int32)
    else:
        idx = np.full((n,), id_to_idx[subj_id], dtype=np.int32)
    return _subject_conv_bn_call(
        x, kernel_params["w_folded"], kernel_params["shift"], jnp.asarray(idx),
        kernel_size=kernel_size, stride=downsample, pad=padding)


# ----------------------------------------------------------------------------
# Pure-numpy (float64) reference for correctness
# ----------------------------------------------------------------------------
def _reference_forward(x, subj_idx, params, *, stride, pad):
    x = np.asarray(x, np.float64)
    w = np.asarray(params["conv_w"], np.float64)            # (S, C_out, C_in, K)
    bn = params["bn"]
    gamma = np.asarray(bn["gamma"], np.float64)
    beta = np.asarray(bn["beta"], np.float64)
    mean = np.asarray(bn["running_mean"], np.float64)
    var = np.asarray(bn["running_var"], np.float64)
    N, C_in, L = x.shape
    S, C_out, _, K = w.shape
    xp = np.pad(x, ((0, 0), (0, 0), (pad, pad)))
    L_out = (L + 2 * pad - K) // stride + 1
    # cols[n, c, k, l] = xp[n, c, l*stride + k]
    cols = np.stack([xp[:, :, k:k + (L_out - 1) * stride + 1:stride]
                     for k in range(K)], axis=2)
    out = np.empty((N, C_out, L_out))
    for i in range(N):
        out[i] = np.einsum("ock,ckl->ol", w[subj_idx[i]], cols[i])
    scale = gamma / np.sqrt(var + bn["eps"])
    shift = beta - mean * scale
    return out * scale[None, :, None] + shift[None, :, None]


# ----------------------------------------------------------------------------
if __name__ == "__main__":
    # Small EEG-like demo config (chosen so L_out = 128 -> lane-dense output).
    N, C_in, L_in = 2, 4, 256
    C_out, K = 16, 5
    downsample = 2
    padding = max(0, (K - downsample + 1) // 2)      # = 2 (same formula the ResNet uses)
    subject_ids = [0, 1]
    L_out = (L_in + 2 * padding - K) // downsample + 1

    key = jax.random.PRNGKey(0)
    k_par, k_x = jax.random.split(key)
    params = init_subject_module_params(k_par, subject_ids, C_in, C_out, K)
    kernel_params = prepare_kernel_params(params)
    x = jax.random.normal(k_x, (N, C_in, L_in), jnp.float32)

    # scalar subj_id: one conv for the whole batch
    out_scalar = subject_module_forward(x, 0, params, kernel_params,
                                        kernel_size=K, downsample=downsample,
                                        padding=padding)
    out_scalar = jax.block_until_ready(out_scalar)
    assert out_scalar.shape == (N, C_out, L_out), out_scalar.shape
    ref_scalar = _reference_forward(x, np.zeros((N,), np.int32), params,
                                    stride=downsample, pad=padding)
    np.testing.assert_allclose(np.asarray(out_scalar, np.float64), ref_scalar,
                               rtol=3e-2, atol=3e-2)

    # list subj_id: a different conv per sample (PyTorch list branch)
    out_list = subject_module_forward(x, [1, 0], params, kernel_params,
                                      kernel_size=K, downsample=downsample,
                                      padding=padding)
    out_list = jax.block_until_ready(out_list)
    assert out_list.shape == (N, C_out, L_out), out_list.shape
    ref_list = _reference_forward(x, np.array([1, 0], np.int32), params,
                                  stride=downsample, pad=padding)
    np.testing.assert_allclose(np.asarray(out_list, np.float64), ref_list,
                               rtol=3e-2, atol=3e-2)

    assert bool(jnp.all(jnp.isfinite(out_scalar))) and bool(jnp.all(jnp.isfinite(out_list)))
    print("KERNEL_OK")
</pallas_src>

<mosaic_0001>
module attributes {stable_mosaic.version = 11 : i64} {
  func.func @kernel(%arg0: i32, %arg1: memref<2xi32, #tpu.memory_space<smem>>, %arg2: memref<1x4x256xf32, #tpu.memory_space<vmem>>, %arg3: memref<1x16x20xf32, #tpu.memory_space<vmem>>, %arg4: memref<16x1xf32, #tpu.memory_space<vmem>>, %arg5: memref<256x128xf32, #tpu.memory_space<vmem>>, %arg6: memref<1x16x128xf32, #tpu.memory_space<vmem>>, %arg7: memref<4x260xf32, #tpu.memory_space<vmem>>, %arg8: memref<20x256xf32, #tpu.memory_space<vmem>>) attributes {dimension_semantics = [#tpu.dimension_semantics<parallel>], iteration_bounds = array<i64: 2>, scalar_prefetch = 1 : i64, scratch_operands = 2 : i64, tpu.core_type = #tpu.core_type<tc>, window_params = [{transform_indices = @transform_0, window_bounds = array<i64: 1, 4, 256>}, {transform_indices = @transform_1, window_bounds = array<i64: 1, 16, 20>}, {pipeline_mode = #tpu.pipeline_mode<synchronous>, transform_indices = @transform_2, window_bounds = array<i64: 16, 1>}, {pipeline_mode = #tpu.pipeline_mode<synchronous>, transform_indices = @transform_3, window_bounds = array<i64: 256, 128>}, {transform_indices = @transform_4, window_bounds = array<i64: 1, 16, 128>}]} {
    %cst = arith.constant 0.000000e+00 : f32
    %0 = vector.broadcast %cst : f32 to vector<4x260xf32>
    %c0 = arith.constant 0 : index
    %c0_0 = arith.constant 0 : index
    %1 = vector.load %arg7[%c0, %c0_0] : memref<4x260xf32, #tpu.memory_space<vmem>>, vector<4x260xf32>
    tpu.vector_store %arg7[%c0, %c0_0], %0 {strides = array<i32>} : memref<4x260xf32, #tpu.memory_space<vmem>>, vector<4x260xf32>,
    %c0_1 = arith.constant 0 : index
    %c0_2 = arith.constant 0 : index
    %c0_3 = arith.constant 0 : index
    %2 = vector.load %arg2[%c0_1, %c0_2, %c0_3] : memref<1x4x256xf32, #tpu.memory_space<vmem>>, vector<1x4x256xf32>
    %3 = vector.shape_cast %2 : vector<1x4x256xf32> to vector<4x256xf32>
    %c0_4 = arith.constant 0 : index
    %c2 = arith.constant 2 : index
    %4 = vector.load %arg7[%c0_4, %c2] : memref<4x260xf32, #tpu.memory_space<vmem>>, vector<4x256xf32>
    tpu.vector_store %arg7[%c0_4, %c2], %3 {strides = array<i32>} : memref<4x260xf32, #tpu.memory_space<vmem>>, vector<4x256xf32>,
    %c0_5 = arith.constant 0 : index
    %c0_6 = arith.constant 0 : index
    %5 = vector.load %arg7[%c0_5, %c0_6] : memref<4x260xf32, #tpu.memory_space<vmem>>, vector<4x256xf32>
    %c0_7 = arith.constant 0 : index
    %c0_8 = arith.constant 0 : index
    %6 = vector.load %arg8[%c0_7, %c0_8] : memref<20x256xf32, #tpu.memory_space<vmem>>, vector<4x256xf32>
    tpu.vector_store %arg8[%c0_7, %c0_8], %5 {strides = array<i32>} : memref<20x256xf32, #tpu.memory_space<vmem>>, vector<4x256xf32>,
    %c0_9 = arith.constant 0 : index
    %c1 = arith.constant 1 : index
    %7 = vector.load %arg7[%c0_9, %c1] : memref<4x260xf32, #tpu.memory_space<vmem>>, vector<4x256xf32>
    %c4 = arith.constant 4 : index
    %c0_10 = arith.constant 0 : index
    %8 = vector.load %arg8[%c4, %c0_10] : memref<20x256xf32, #tpu.memory_space<vmem>>, vector<4x256xf32>
    tpu.vector_store %arg8[%c4, %c0_10], %7 {strides = array<i32>} : memref<20x256xf32, #tpu.memory_space<vmem>>, vector<4x256xf32>,
    %c0_11 = arith.constant 0 : index
    %c2_12 = arith.constant 2 : index
    %9 = vector.load %arg7[%c0_11, %c2_12] : memref<4x260xf32, #tpu.memory_space<vmem>>, vector<4x256xf32>
    %c8 = arith.constant 8 : index
    %c0_13 = arith.constant 0 : index
    %10 = vector.load %arg8[%c8, %c0_13] : memref<20x256xf32, #tpu.memory_space<vmem>>, vector<4x256xf32>
    tpu.vector_store %arg8[%c8, %c0_13], %9 {strides = array<i32>} : memref<20x256xf32, #tpu.memory_space<vmem>>, vector<4x256xf32>,
    %c0_14 = arith.constant 0 : index
    %c3 = arith.constant 3 : index
    %11 = vector.load %arg7[%c0_14, %c3] : memref<4x260xf32, #tpu.memory_space<vmem>>, vector<4x256xf32>
    %c12 = arith.constant 12 : index
    %c0_15 = arith.constant 0 : index
    %12 = vector.load %arg8[%c12, %c0_15] : memref<20x256xf32, #tpu.memory_space<vmem>>, vector<4x256xf32>
    tpu.vector_store %arg8[%c12, %c0_15], %11 {strides = array<i32>} : memref<20x256xf32, #tpu.memory_space<vmem>>, vector<4x256xf32>,
    %c0_16 = arith.constant 0 : index
    %c4_17 = arith.constant 4 : index
    %13 = vector.load %arg7[%c0_16, %c4_17] : memref<4x260xf32, #tpu.memory_space<vmem>>, vector<4x256xf32>
    %c16 = arith.constant 16 : index
    %c0_18 = arith.constant 0 : index
    %14 = vector.load %arg8[%c16, %c0_18] : memref<20x256xf32, #tpu.memory_space<vmem>>, vector<4x256xf32>
    tpu.vector_store %arg8[%c16, %c0_18], %13 {strides = array<i32>} : memref<20x256xf32, #tpu.memory_space<vmem>>, vector<4x256xf32>,
    %c0_19 = arith.constant 0 : index
    %c0_20 = arith.constant 0 : index
    %c0_21 = arith.constant 0 : index
    %15 = vector.load %arg3[%c0_19, %c0_20, %c0_21] : memref<1x16x20xf32, #tpu.memory_space<vmem>>, vector<1x16x20xf32>
    %16 = vector.shape_cast %15 : vector<1x16x20xf32> to vector<16x20xf32>
    %c0_22 = arith.constant 0 : index
    %c0_23 = arith.constant 0 : index
    %17 = vector.load %arg8[%c0_22, %c0_23] : memref<20x256xf32, #tpu.memory_space<vmem>>, vector<20x256xf32>
    %cst_24 = arith.constant dense<0.000000e+00> : vector<16x256xf32>
    %18 = tpu.matmul %16, %17, %cst_24 {dimension_numbers = #tpu.dot_dimension_numbers<[1], [0], [0], [1], [0, 0, 1, 1], [], []>} : vector<16x20xf32>, vector<20x256xf32>, vector<16x256xf32> -> vector<16x256xf32>
    %c0_25 = arith.constant 0 : index
    %c0_26 = arith.constant 0 : index
    %19 = vector.load %arg5[%c0_25, %c0_26] : memref<256x128xf32, #tpu.memory_space<vmem>>, vector<256x128xf32>
    %cst_27 = arith.constant dense<0.000000e+00> : vector<16x128xf32>
    %20 = tpu.matmul %18, %19, %cst_27 {dimension_numbers = #tpu.dot_dimension_numbers<[1], [0], [0], [1], [0, 0, 1, 1], [], []>} : vector<16x256xf32>, vector<256x128xf32>, vector<16x128xf32> -> vector<16x128xf32>
    %c0_28 = arith.constant 0 : index
    %c0_29 = arith.constant 0 : index
    %21 = vector.load %arg4[%c0_28, %c0_29] : memref<16x1xf32, #tpu.memory_space<vmem>>, vector<16x1xf32>
    %22 = vector.broadcast %21 : vector<16x1xf32> to vector<16x128xf32>
    %23 = arith.addf %20, %22 : vector<16x128xf32>
    %c0_30 = arith.constant 0 : index
    %c0_31 = arith.constant 0 : index
    %c0_32 = arith.constant 0 : index
    %24 = vector.load %arg6[%c0_30, %c0_31, %c0_32] : memref<1x16x128xf32, #tpu.memory_space<vmem>>, vector<1x16x128xf32>
    %25 = vector.shape_cast %24 : vector<1x16x128xf32> to vector<16x128xf32>
    %26 = vector.shape_cast %23 : vector<16x128xf32> to vector<1x16x128xf32>
    tpu.vector_store %arg6[%c0_30, %c0_31, %c0_32], %26 {strides = array<i32>} : memref<1x16x128xf32, #tpu.memory_space<vmem>>, vector<1x16x128xf32>,
    return
  }
  func.func @transform_0(%arg0: i32, %arg1: memref<2xi32, #tpu.memory_space<smem>>) -> (i32, i32, i32) {
    %c0_i32 = arith.constant 0 : i32
    %c0_i32_0 = arith.constant 0 : i32
    %c0_i32_1 = arith.constant 0 : i32
    return %arg0, %c0_i32, %c0_i32_0 : i32, i32, i32
  }
  func.func @transform_1(%arg0: i32, %arg1: memref<2xi32, #tpu.memory_space<smem>>) -> (i32, i32, i32) {
    %0 = arith.index_cast %arg0 : i32 to index
    %1 = memref.load %arg1[%0] : memref<2xi32, #tpu.memory_space<smem>>
    %c0_i32 = arith.constant 0 : i32
    %c0_i32_0 = arith.constant 0 : i32
    %c0_i32_1 = arith.constant 0 : i32
    return %1, %c0_i32, %c0_i32_0 : i32, i32, i32
  }
  func.func @transform_2(%arg0: i32, %arg1: memref<2xi32, #tpu.memory_space<smem>>) -> (i32, i32) {
    %c0_i32 = arith.constant 0 : i32
    %c0_i32_0 = arith.constant 0 : i32
    %c0_i32_1 = arith.constant 0 : i32
    return %c0_i32, %c0_i32_0 : i32, i32
  }
  func.func @transform_3(%arg0: i32, %arg1: memref<2xi32, #tpu.memory_space<smem>>) -> (i32, i32) {
    %c0_i32 = arith.constant 0 : i32
    %c0_i32_0 = arith.constant 0 : i32
    %c0_i32_1 = arith.constant 0 : i32
    return %c0_i32, %c0_i32_0 : i32, i32
  }
  func.func @transform_4(%arg0: i32, %arg1: memref<2xi32, #tpu.memory_space<smem>>) -> (i32, i32, i32) {
    %c0_i32 = arith.constant 0 : i32
    %c0_i32_0 = arith.constant 0 : i32
    %c0_i32_1 = arith.constant 0 : i32
    return %arg0, %c0_i32, %c0_i32_0 : i32, i32, i32
  }
}

</mosaic_0001>

<llo_original>
// kernel: tpu_custom_call.1
$region0: #{tpu_custom_call.1}
  #allocation0 [shape = 'u32[]', space=smem, size = 0x4, offset = 0x4, fixed_abs, tag = 'smem constant byte address 0x4 - core index']
  #allocation1 [shape = 'u32[144,128]{1,0:T(1,128)}', space=vmem, size = 0x12000, scoped, tag = 'internal scratch']
  #allocation2 [shape = 'f32[4,260]{1,0:T(4,128)}', space=vmem, size = 0x1800, scoped, tag = 'scratch operand']
  #allocation3 [shape = 'f32[20,256]{1,0:T(8,128)}', space=vmem, size = 0x6000, scoped, tag = 'scratch operand']
  #allocation4 [shape = 's32[1]{0}', space=sflag, size = 0x4, scoped, tag = 'scoped memory for tpu_custom_call.1']
  #allocation5 [shape = 'u8[512]{0}', space=smem, size = 0x200, scoped, tag = 'prefetched SMEM operand 0']
  %s0 = inlined_call_operand.vmem [shape: s32[2], index: 0, kind: input, shape index: {}]
  %s1 = inlined_call_operand.vmem [shape: f32[2,4,256], index: 1, kind: input, shape index: {}]
  %s2 = inlined_call_operand.hbm [shape: f32[2,16,20], index: 2, kind: input, shape index: {}]
  %s3 = inlined_call_operand.vmem [shape: f32[16,1], index: 3, kind: input, shape index: {}]
  %s4 = inlined_call_operand.hbm [shape: f32[256,128], index: 4, kind: input, shape index: {}]
  %s5 = inlined_call_operand.hbm [shape: f32[2,16,128], index: 5, kind: output, shape index: {}]
  %s6 = sld [smem:[#allocation0]]
  $region57: #{tpu_custom_call.1} parent=0
    _
  %s8 = ssub.s32 1, %s6
  %s9 = scalar_select 0, %s8, %s6
  %s10 = sshll.u32 %s0, 4
  %s11 = int_to_ptr.vmem [resolvable:$true] %s10
  %13 = dma.vmem_to_smem %s11, 16, [#allocation5], [#allocation4]
  %14 = dma.done [#allocation4], 16
  %15 = sfence
  $region1: #{tpu_custom_call.1} parent=0
    #allocation6 [shape = 'u8[16384]{0}', space=vmem, size = 0x4000, scoped, tag = 'input window, operand 2']
    #allocation7 [shape = 's32[2]{0}', space=sflag, size = 0x8, scoped, tag = 'scoped memory for tpu_custom_call.1']
    #allocation8 [shape = 's32[2]{0}', space=sflag, size = 0x8, scoped, tag = 'scoped memory for tpu_custom_call.1']
    #allocation9 [shape = 'u8[131072]{0}', space=vmem, size = 0x20000, scoped, tag = 'input window, operand 4, single buffered']
    #allocation10 [shape = 's32[1]{0}', space=sflag, size = 0x4, scoped, tag = 'scoped memory for tpu_custom_call.1']
    #allocation11 [shape = 'u8[16384]{0}', space=vmem, size = 0x4000, scoped, tag = 'output window, operand 0']
    %16 = vsyncpa [#allocation7], 0
    %s17 = scalar_lea.sflag [#allocation7], 1
    %18 = vsyncpa %s17, 0
    %19 = vsyncpa [#allocation10], 0
    %20 = vsyncpa [#allocation8], 0
    %s21 = scalar_lea.sflag [#allocation8], 1
    %22 = vsyncpa %s21, 0
    loop: start=0, step=1, limit=4
    $region2: #{tpu_custom_call.1} parent=1 // loop_pre_header
      _
    $region3: #{tpu_custom_call.1} parent=1 // loop_header
      %s24 = sphi 0, %s28
      %p25 = scmp.ge.s32.totalorder %s24, 4
      %s34 = sphi 0, %s36
      %s37 = sphi 0, %s34
      %s38 = sphi 0, %s37
      %s54 = sphi 0, %s38
      %s62 = sphi 0, %s64
      %s65 = sphi 0, %s62
      %s66 = sphi 0, %s65
      %s82 = sphi 0, %s66
      %s86 = sphi 0, %s86
      %s88 = sphi 0, %s86
      %s89 = sphi 0, %s88
      %s103 = sphi 0, %s89
      %s107 = sphi 0, %s107
      %s109 = sphi 0, %s107
      %s110 = sphi 0, %s109
      %s124 = sphi 0, %s110
      %s130 = sphi 0, %s132
      %s133 = sphi 0, %s130
      %s134 = sphi 0, %s133
      %s150 = sphi 0, %s134
    $region4: #{tpu_custom_call.1} parent=1 // loop_header_branch
      %27 = sbr.rel (%p25) target = $region8
    $region5: #{tpu_custom_call.1} parent=1 // loop_body
      %s29 = ssub.s32 %s24, 1
      %s30 = ssub.s32 %s24, 2
      %s31 = sadd.s32 %s24, 1
      %s32 = ssub.s32 %s24, %s31
      %p33 = scmp.eq.s32.totalorder %s32, 0
      %s35 = sadd.s32 %s34, 1
      %s36 = scalar_select %p33, %s34, %s35
      %p39 = pneg %p33
      %p40 = scmp.eq.s32.totalorder %s24, 1
      %p41 = por %p39, %p40
      %p42 = scmp.ne.s32.totalorder %s34, %s37
      %p43 = scmp.eq.s32.totalorder %s24, 0
      %p44 = por %p42, %p43
      %p45 = scmp.ne.s32.totalorder %s34, %s37
      %p46 = scmp.eq.s32.totalorder %s29, 1
      %p47 = por %p45, %p46
      %p48 = scmp.ne.s32.totalorder %s37, %s38
      %p49 = scmp.eq.s32.totalorder %s29, 0
      %p50 = por %p48, %p49
      %p51 = scmp.ne.s32.totalorder %s37, %s38
      %p52 = scmp.eq.s32.totalorder %s30, 1
      %p53 = por %p51, %p52
      %p55 = scmp.ne.s32.totalorder %s38, %s54
      %p56 = scmp.eq.s32.totalorder %s30, 0
      %p57 = por %p55, %p56
      %s58 = sld [smem:[#allocation5 + %s24]]
      %s59 = sld [smem:[#allocation5 + %s31]]
      %s60 = ssub.s32 %s58, %s59
      %p61 = scmp.eq.s32.totalorder %s60, 0
      %s63 = sadd.s32 %s62, 1
      %s64 = scalar_select %p61, %s62, %s63
      %p67 = pneg %p61
      %p68 = scmp.eq.s32.totalorder %s24, 1
      %p69 = por %p67, %p68
      %p70 = scmp.ne.s32.totalorder %s62, %s65
      %p71 = scmp.eq.s32.totalorder %s24, 0
      %p72 = por %p70, %p71
      %p73 = scmp.ne.s32.totalorder %s62, %s65
      %p74 = scmp.eq.s32.totalorder %s29, 1
      %p75 = por %p73, %p74
      %p76 = scmp.ne.s32.totalorder %s65, %s66
      %p77 = scmp.eq.s32.totalorder %s29, 0
      %p78 = por %p76, %p77
      %p79 = scmp.ne.s32.totalorder %s65, %s66
      %p80 = scmp.eq.s32.totalorder %s30, 1
      %p81 = por %p79, %p80
      %p83 = scmp.ne.s32.totalorder %s66, %s82
      %p84 = scmp.eq.s32.totalorder %s30, 0
      %p85 = por %p83, %p84
      %s87 = sadd.s32 %s86, 1
      %p90 = scmp.eq.s32.totalorder %s24, 1
      %p91 = scmp.ne.s32.totalorder %s86, %s88
      %p92 = scmp.eq.s32.totalorder %s24, 0
      %p93 = por %p91, %p92
      %p94 = scmp.ne.s32.totalorder %s86, %s88
      %p95 = scmp.eq.s32.totalorder %s29, 1
      %p96 = por %p94, %p95
      %p97 = scmp.ne.s32.totalorder %s88, %s89
      %p98 = scmp.eq.s32.totalorder %s29, 0
      %p99 = por %p97, %p98
      %p100 = scmp.ne.s32.totalorder %s88, %s89
      %p101 = scmp.eq.s32.totalorder %s30, 1
      %p102 = por %p100, %p101
      %p104 = scmp.ne.s32.totalorder %s89, %s103
      %p105 = scmp.eq.s32.totalorder %s30, 0
      %p106 = por %p104, %p105
      %s108 = sadd.s32 %s107, 1
      %p111 = scmp.eq.s32.totalorder %s24, 1
      %p112 = scmp.ne.s32.totalorder %s107, %s109
      %p113 = scmp.eq.s32.totalorder %s24, 0
      %p114 = por %p112, %p113
      %p115 = scmp.ne.s32.totalorder %s107, %s109
      %p116 = scmp.eq.s32.totalorder %s29, 1
      %p117 = por %p115, %p116
      %p118 = scmp.ne.s32.totalorder %s109, %s110
      %p119 = scmp.eq.s32.totalorder %s29, 0
      %p120 = por %p118, %p119
      %p121 = scmp.ne.s32.totalorder %s109, %s110
      %p122 = scmp.eq.s32.totalorder %s30, 1
      %p123 = por %p121, %p122
      %p125 = scmp.ne.s32.totalorder %s110, %s124
      %p126 = scmp.eq.s32.totalorder %s30, 0
      %p127 = por %p125, %p126
      %s128 = ssub.s32 %s24, %s31
      %p129 = scmp.eq.s32.totalorder %s128, 0
      %s131 = sadd.s32 %s130, 1
      %s132 = scalar_select %p129, %s130, %s131
      %p135 = pneg %p129
      %p136 = scmp.eq.s32.totalorder %s24, 1
      %p137 = por %p135, %p136
      %p138 = scmp.ne.s32.totalorder %s130, %s133
      %p139 = scmp.eq.s32.totalorder %s24, 0
      %p140 = por %p138, %p139
      %p141 = scmp.ne.s32.totalorder %s130, %s133
      %p142 = scmp.eq.s32.totalorder %s29, 1
      %p143 = por %p141, %p142
      %p144 = scmp.ne.s32.totalorder %s133, %s134
      %p145 = scmp.eq.s32.totalorder %s29, 0
      %p146 = por %p144, %p145
      %p147 = scmp.ne.s32.totalorder %s133, %s134
      %p148 = scmp.eq.s32.totalorder %s30, 1
      %p149 = por %p147, %p148
      %p151 = scmp.ne.s32.totalorder %s134, %s150
      %p152 = scmp.eq.s32.totalorder %s30, 0
      %p153 = por %p151, %p152
      %p154 = scmp.le.s32.totalorder 1, %s24
      %p155 = scmp.lt.s32.totalorder %s24, 3
      %p156 = pnand %p154, %p155
      %p157 = pneg %p156
      // Predicated region
      $region9: #{tpu_custom_call.1} parent=5 // pred_check
        _
      $region10: #{tpu_custom_call.1} parent=5 // pred_check_branch
        %159 = sbr.rel (%p156) target = $region12
      $region11: #{tpu_custom_call.1} parent=5 // pred_region
        %s160 = ssub.s32 %s24, 1
        // Predicated region
        $region13: #{tpu_custom_call.1} parent=11 // pred_check
          %p161 = pneg %p99
        $region14: #{tpu_custom_call.1} parent=11 // pred_check_branch
          %163 = sbr.rel (%p161) target = $region16
        $region15: #{tpu_custom_call.1} parent=11 // pred_region
          _
        $region16: #{tpu_custom_call.1} parent=11 // pred_fallthru
          _
        // Predicated region
        $region17: #{tpu_custom_call.1} parent=11 // pred_check
          %p164 = pneg %p120
        $region18: #{tpu_custom_call.1} parent=11 // pred_check_branch
          %166 = sbr.rel (%p164) target = $region20
        $region19: #{tpu_custom_call.1} parent=11 // pred_region
          %s168 = ssub.s32 4096, 4096
          %169 = vsyncadd [#allocation10], %s168
          %s170 = sshll.u32 [#allocation9], 4
          %s171 = int_to_ptr.vmem [resolvable:$true] %s170
          %176 = dma.hbm_to_vmem [thread:$0]  %s4, 4096, %s171, [#allocation10], 128, 128, 8
        $region20: #{tpu_custom_call.1} parent=11 // pred_fallthru
          _
      $region12: #{tpu_custom_call.1} parent=5 // pred_fallthru
        _
      %p177 = scmp.lt.s32.totalorder %s24, 2
      // Predicated region
      $region21: #{tpu_custom_call.1} parent=5 // pred_check
        %p178 = pneg %p177
      $region22: #{tpu_custom_call.1} parent=5 // pred_check_branch
        %180 = sbr.rel (%p178) target = $region24
      $region23: #{tpu_custom_call.1} parent=5 // pred_region
        // Predicated region
        $region25: #{tpu_custom_call.1} parent=23 // pred_check
          %p181 = pneg %p44
        $region26: #{tpu_custom_call.1} parent=23 // pred_check_branch
          %183 = sbr.rel (%p181) target = $region28
        $region27: #{tpu_custom_call.1} parent=23 // pred_region
          %p184 = scmp.lt.s32.totalorder %s24, 1
          %s185 = scalar_select %p184, %s24, 1
          %s186 = smul.addr %s185, 2
          %s187 = smul.addr %s186, 4
          %s188 = scalar_lea.vmem %s1, %s187
        $region28: #{tpu_custom_call.1} parent=23 // pred_fallthru
          _
        // Predicated region
        $region29: #{tpu_custom_call.1} parent=23 // pred_check
          %p189 = pneg %p72
        $region30: #{tpu_custom_call.1} parent=23 // pred_check_branch
          %191 = sbr.rel (%p189) target = $region32
        $region31: #{tpu_custom_call.1} parent=23 // pred_region
          %s192 = sand.u32 %s62, 1
          %s193 = scalar_lea.sflag [#allocation7], %s192
          %s194 = sand.u32 %s62, 1
          %s195 = smul.addr %s194, 16
          %s196 = scalar_lea.vmem [#allocation6], %s195
          %s197 = sld [smem:[#allocation5 + %s24]]
          %s199 = ssub.s32 256, 256
          %200 = vsyncadd %s193, %s199
          %s201 = smul.addr %s197, 2
          %s202 = smul.addr %s201, 128
          %s203 = scalar_lea.hbm %s2, %s202
          %s204 = sshll.u32 %s196, 4
          %s205 = int_to_ptr.vmem [resolvable:$true] %s204
          %210 = dma.hbm_to_vmem [thread:$0]  %s203, 256, %s205, %s193, 128, 128, 8
        $region32: #{tpu_custom_call.1} parent=23 // pred_fallthru
          _
      $region24: #{tpu_custom_call.1} parent=5 // pred_fallthru
        _
      %p211 = scmp.le.s32.totalorder 1, %s24
      %p212 = scmp.lt.s32.totalorder %s24, 3
      %p213 = pnand %p211, %p212
      %p214 = pneg %p213
      // Predicated region
      $region33: #{tpu_custom_call.1} parent=5 // pred_check
        _
      $region34: #{tpu_custom_call.1} parent=5 // pred_check_branch
        %216 = sbr.rel (%p213) target = $region36
      $region35: #{tpu_custom_call.1} parent=5 // pred_region
        %s217 = ssub.s32 %s24, 1
        %s218 = sand.u32 %s65, 1
        %s219 = scalar_lea.sflag [#allocation7], %s218
        %s220 = sand.u32 %s65, 1
        %s221 = smul.addr %s220, 16
        %s222 = scalar_lea.vmem [#allocation6], %s221
        // Predicated region
        $region37: #{tpu_custom_call.1} parent=35 // pred_check
          %p223 = pneg %p78
        $region38: #{tpu_custom_call.1} parent=35 // pred_check_branch
          %225 = sbr.rel (%p223) target = $region40
        $region39: #{tpu_custom_call.1} parent=35 // pred_region
          %226 = dma.done %s219, 256
        $region40: #{tpu_custom_call.1} parent=35 // pred_fallthru
          _
        // Predicated region
        $region41: #{tpu_custom_call.1} parent=35 // pred_check
          %p227 = pneg %p120
        $region42: #{tpu_custom_call.1} parent=35 // pred_check_branch
          %229 = sbr.rel (%p227) target = $region44
        $region43: #{tpu_custom_call.1} parent=35 // pred_region
          %230 = dma.done [#allocation10], 4096
        $region44: #{tpu_custom_call.1} parent=35 // pred_fallthru
          _
        %p231 = scmp.lt.s32.totalorder %s29, 1
        %s232 = scalar_select %p231, %s29, 1
        %s233 = smul.addr %s232, 2
        %s234 = smul.addr %s233, 4
        %s235 = scalar_lea.vmem %s1, %s234
        %p236 = pneg %p50
        %p237 = pneg %p47
        %s238 = sand.u32 %s65, 1
        %s239 = scalar_lea.sflag [#allocation7], %s238
        %s240 = sand.u32 %s65, 1
        %s241 = smul.addr %s240, 16
        %s242 = scalar_lea.vmem [#allocation6], %s241
        %p243 = pneg %p78
        %p244 = pneg %p75
        %p245 = pneg %p99
        %p246 = pneg %p96
        %p247 = pneg %p120
        %p248 = pneg %p117
        %p249 = pneg %p146
        %p250 = pneg %p143
        %s251 = sand.u32 %s133, 1
        %s252 = scalar_lea.sflag [#allocation8], %s251
        %s253 = sand.u32 %s133, 1
        %s254 = smul.addr %s253, 16
        %s255 = scalar_lea.vmem [#allocation11], %s254
        %p256 = scmp.lt.s32.totalorder %s29, 1
        %s257 = scalar_select %p256, %s29, 1
        %s258 = smul.addr %s257, 2
        %s259 = smul.addr %s258, 4
        %s260 = scalar_lea.vmem %s1, %s259
        %s261 = sld [smem:[#allocation5 + %s29]]
        %262 = vst [vmem:[#allocation2] sm:$0xff] 0.0
        %vm263 = vcmask 27648
        %264 = vst.msk [vmem:[#allocation2 + $0x8] sm:$0xf] %vm263, 0.0
        %v265 = vld [vmem:[%s260] sm:$0xff]
        %267 = vrot.lane.b32.xlu0 %v265, 2
        %v268 = vpop.permute.xlu0 %267
        %v269 = vrot.slane %v268, 4
        %vm270 = vcmask 15360
        %v271 = vsel %vm270, %v269, %v268
        %vm274 = vcmask 1043472
        %vm275 = vcmask 1047556
        %vm276 = vmor %vm275, %vm274
        %277 = vst.msk [vmem:[#allocation2] sm:$0xff] %vm276, %v271
        %vm278 = vcmask 11264
        %279 = vst.msk [vmem:[#allocation2 + $0x8] sm:$0xf] %vm278, %v269
        %v280 = vld [vmem:[#allocation2] sm:$0xff]
        %v282 = vcombine.high %v280, %v280
        %284 = vst [vmem:[#allocation3] sm:$0xf] %v280
        %285 = vst [vmem:[#allocation3 + $0x8] sm:$0xf] %v282
        %v286 = vld [vmem:[#allocation2] sm:$0xff]
        %v287 = vld [vmem:[#allocation2 + $0x8] sm:$0xf]
        %v290 = vcombine.low %v286, %v286
        %v291 = vcombine.low %v287, %v287
        %292 = vrot.lane.b32.xlu0 %v290, 127
        %v293 = vpop.permute.xlu0 %292
        %294 = vrot.lane.b32.xlu0 %v286, 127
        %v295 = vpop.permute.xlu0 %294
        %296 = vrot.lane.b32.xlu0 %v291, 127
        %v297 = vpop.permute.xlu0 %296
        %vm298 = vcmask 1039360
        %v299 = vsel %vm298, %v293, %v295
        %v300 = vsel %vm298, %v295, %v297
        %303 = vst [vmem:[#allocation3] sm:$0xf0] %v299
        %304 = vst [vmem:[#allocation3 + $0x8] sm:$0xf0] %v300
        %v305 = vld [vmem:[#allocation2] sm:$0xff]
        %v306 = vld [vmem:[#allocation2 + $0x8] sm:$0xf]
        %v309 = vcombine.high %v305, %v305
        %310 = vrot.lane.b32.xlu0 %v305, 126
        %v311 = vpop.permute.xlu0 %310
        %312 = vrot.lane.b32.xlu0 %v309, 126
        %v313 = vpop.permute.xlu0 %312
        %314 = vrot.lane.b32.xlu0 %v306, 126
        %v315 = vpop.permute.xlu0 %314
        %vm316 = vcmask 1031168
        %v317 = vsel %vm316, %v311, %v313
        %v318 = vsel %vm316, %v313, %v315
        %321 = vst [vmem:[#allocation3 + $0x10] sm:$0xf] %v317
        %322 = vst [vmem:[#allocation3 + $0x18] sm:$0xf] %v318
        %v323 = vld [vmem:[#allocation2] sm:$0xff]
        %v324 = vld [vmem:[#allocation2 + $0x8] sm:$0xf]
        %v327 = vcombine.low %v323, %v323
        %v328 = vcombine.low %v324, %v324
        %329 = vrot.lane.b32.xlu0 %v327, 125
        %v330 = vpop.permute.xlu0 %329
        %331 = vrot.lane.b32.xlu0 %v323, 125
        %v332 = vpop.permute.xlu0 %331
        %333 = vrot.lane.b32.xlu0 %v328, 125
        %v334 = vpop.permute.xlu0 %333
        %vm335 = vcmask 1022976
        %v336 = vsel %vm335, %v330, %v332
        %v337 = vsel %vm335, %v332, %v334
        %340 = vst [vmem:[#allocation3 + $0x10] sm:$0xf0] %v336
        %341 = vst [vmem:[#allocation3 + $0x18] sm:$0xf0] %v337
        %v342 = vld [vmem:[#allocation2] sm:$0xff]
        %v343 = vld [vmem:[#allocation2 + $0x8] sm:$0xf]
        %v346 = vcombine.high %v342, %v342
        %347 = vrot.lane.b32.xlu0 %v342, 124
        %v348 = vpop.permute.xlu0 %347
        %349 = vrot.lane.b32.xlu0 %v346, 124
        %v350 = vpop.permute.xlu0 %349
        %351 = vrot.lane.b32.xlu0 %v343, 124
        %v352 = vpop.permute.xlu0 %351
        %vm353 = vcmask 1014784
        %v354 = vsel %vm353, %v348, %v350
        %v355 = vsel %vm353, %v350, %v352
        %358 = vst [vmem:[#allocation3 + $0x20] sm:$0xf] %v354
        %359 = vst [vmem:[#allocation3 + $0x28] sm:$0xf] %v355
        %v360 = vld [vmem:[%s222] sm:$0xff]
        %v361 = vld [vmem:[%s222 + $0x8] sm:$0xff]
        %v362 = vld [vmem:[#allocation3] sm:$0xff]
        %v363 = vld [vmem:[#allocation3 + $0x8] sm:$0xff]
        %v364 = vld [vmem:[#allocation3 + $0x10] sm:$0xff]
        %v365 = vld [vmem:[#allocation3 + $0x18] sm:$0xff]
        %v366 = vld [vmem:[#allocation3 + $0x20] sm:$0xf]
        %v367 = vld [vmem:[#allocation3 + $0x28] sm:$0xf]
        %vm368 = vcmask 162816
        %v370 = vsel %vm368, %v360, 0
        %v373 = vsel %vm368, %v361, 0
        %vm375 = vcmask 1043456
        %v377 = vsel %vm375, %v366, 0
        %v380 = vsel %vm375, %v367, 0
        %382 = vmatprep.subr.mxu0 %v363
        %383 = vmatpush1.msra.mxu0 %v362
        %384 = vmatprep.subr.mxu0 %v365
        %385 = vmatpush1.msra.mxu0 %v364
        %386 = vmatprep.subr.mxu0 %v380
        %387 = vmatpush1.msra.mxu0 %v377
        %388 = vmatprep.subr.mxu0 0.0
        %389 = vmatpush1.msra.mxu0 0.0
        %390 = vmatprep.subr.mxu0 0.0
        %391 = vmatpush1.msra.mxu0 0.0
        %392 = vmatprep.subr.mxu0 0.0
        %393 = vmatpush1.msra.mxu0 0.0
        %394 = vmatprep.subr.mxu0 0.0
        %395 = vmatpush1.msra.mxu0 0.0
        %396 = vmatprep.subr.mxu0 0.0
        %397 = vmatpush1.msra.mxu0 0.0
        %398 = vmatprep.subr.mxu0 0.0
        %399 = vmatpush1.msra.mxu0 0.0
        %400 = vmatprep.subr.mxu0 0.0
        %401 = vmatpush1.msra.mxu0 0.0
        %402 = vmatprep.subr.mxu0 0.0
        %403 = vmatpush1.msra.mxu0 0.0
        %404 = vmatprep.subr.mxu0 0.0
        %405 = vmatpush1.msra.mxu0 0.0
        %406 = vmatprep.subr.mxu0 0.0
        %407 = vmatpush1.msra.mxu0 0.0
        %408 = vmatprep.subr.mxu0 0.0
        %409 = vmatpush1.msra.mxu0 0.0
        %410 = vmatprep.subr.mxu0 0.0
        %411 = vmatpush1.msra.mxu0 0.0
        %412 = vmatprep.subr.mxu0 0.0
        %413 = vmatpush1.msra.mxu0 0.0
        %414 = vmatprep.subr.mxu0 0.0
        %415 = vmatpush1.msra.mxu0 0.0
        %416 = vmatprep.subr.mxu0 0.0
        %417 = vmatpush1.msra.mxu0 0.0
        %418 = vmatprep.subr.mxu0 0.0
        %419 = vmatpush1.msra.mxu0 0.0
        %420 = vmatprep.subr.mxu0 0.0
        %421 = vmatpush1.msra.mxu0 0.0
        %422 = vmatprep.subr.mxu0 0.0
        %423 = vmatpush1.msra.mxu0 0.0
        %424 = vmatprep.subr.mxu0 0.0
        %425 = vmatpush1.msra.mxu0 0.0
        %426 = vmatprep.subr.mxu0 0.0
        %427 = vmatpush1.msra.mxu0 0.0
        %428 = vmatprep.subr.mxu0 0.0
        %429 = vmatpush1.msra.mxu0 0.0
        %430 = vmatprep.subr.mxu0 0.0
        %431 = vmatpush1.msra.mxu0 0.0
        %432 = vmatprep.subr.mxu0 0.0
        %433 = vmatpush1.msra.mxu0 0.0
        %434 = vmatprep.subr.mxu0 0.0
        %435 = vmatpush1.msra.mxu0 0.0
        %436 = vmatprep.subr.mxu0 0.0
        %437 = vmatpush1.msra.mxu0 0.0
        %438 = vmatprep.subr.mxu0 0.0
        %439 = vmatpush1.msra.mxu0 0.0
        %440 = vmatprep.subr.mxu0 0.0
        %441 = vmatpush1.msra.mxu0 0.0
        %442 = vmatprep.subr.mxu0 0.0
        %443 = vmatpush1.msra.mxu0 0.0
        %444 = vmatprep.subr.mxu0 0.0
        %445 = vmatpush1.msra.mxu0 0.0
        %446 = vmatprep.mubr.f32.mxu0 0.0
        %447 = vmatmul.mubr.f32.gmra.mrb[0].mxu0 %v370
        %v448 = vpop.f32.mrb[0].mxu0
        %v449 = vadd.f32 0.0, %v448
        %v450 = vpop.f32.mrb[0].mxu0
        %v451 = vadd.f32 0.0, %v450
        %452 = vmatprep.mubr.f32.mxu0 0.0
        %453 = vmatmul.mubr.f32.gmra.mrb[0].mxu0 %v373
        %v454 = vpop.f32.mrb[0].mxu0
        %v455 = vadd.f32 0.0, %v454
        %v456 = vpop.f32.mrb[0].mxu0
        %v457 = vadd.f32 0.0, %v456
        %458 = vdwg.mxu0
        %v459 = vld [vmem:[#allocation9] sm:$0xff]
        %v460 = vld [vmem:[#allocation9 + $0x8] sm:$0xff]
        %v461 = vld [vmem:[#allocation9 + $0x10] sm:$0xff]
        %v462 = vld [vmem:[#allocation9 + $0x18] sm:$0xff]
        %v463 = vld [vmem:[#allocation9 + $0x20] sm:$0xff]
        %v464 = vld [vmem:[#allocation9 + $0x28] sm:$0xff]
        %v465 = vld [vmem:[#allocation9 + $0x30] sm:$0xff]
        %v466 = vld [vmem:[#allocation9 + $0x38] sm:$0xff]
        %v467 = vld [vmem:[#allocation9 + $0x40] sm:$0xff]
        %v468 = vld [vmem:[#allocation9 + $0x48] sm:$0xff]
        %v469 = vld [vmem:[#allocation9 + $0x50] sm:$0xff]
        %v470 = vld [vmem:[#allocation9 + $0x58] sm:$0xff]
        %v471 = vld [vmem:[#allocation9 + $0x60] sm:$0xff]
        %v472 = vld [vmem:[#allocation9 + $0x68] sm:$0xff]
        %v473 = vld [vmem:[#allocation9 + $0x70] sm:$0xff]
        %v474 = vld [vmem:[#allocation9 + $0x78] sm:$0xff]
        %v475 = vld [vmem:[#allocation9 + $0x80] sm:$0xff]
        %v476 = vld [vmem:[#allocation9 + $0x88] sm:$0xff]
        %v477 = vld [vmem:[#allocation9 + $0x90] sm:$0xff]
        %v478 = vld [vmem:[#allocation9 + $0x98] sm:$0xff]
        %v479 = vld [vmem:[#allocation9 + $0xa0] sm:$0xff]
        %v480 = vld [vmem:[#allocation9 + $0xa8] sm:$0xff]
        %v481 = vld [vmem:[#allocation9 + $0xb0] sm:$0xff]
        %v482 = vld [vmem:[#allocation9 + $0xb8] sm:$0xff]
        %v483 = vld [vmem:[#allocation9 + $0xc0] sm:$0xff]
        %v484 = vld [vmem:[#allocation9 + $0xc8] sm:$0xff]
        %v485 = vld [vmem:[#allocation9 + $0xd0] sm:$0xff]
        %v486 = vld [vmem:[#allocation9 + $0xd8] sm:$0xff]
        %v487 = vld [vmem:[#allocation9 + $0xe0] sm:$0xff]
        %v488 = vld [vmem:[#allocation9 + $0xe8] sm:$0xff]
        %v489 = vld [vmem:[#allocation9 + $0xf0] sm:$0xff]
        %v490 = vld [vmem:[#allocation9 + $0xf8] sm:$0xff]
        %v491 = vld [vmem:[%s3] sm:$0xff]
        %v492 = vld [vmem:[%s3 + $0x8] sm:$0xff]
        %494 = vset.pattern.permute.xlu0 0
        %495 = vperm.xlu0 %494, %v491
        %v496 = vpop.permute.xlu0 %495
        %499 = vset.pattern.permute.xlu0 0
        %500 = vperm.xlu0 %499, %v492
        %v501 = vpop.permute.xlu0 %500
        %503 = vmatprep.subr.mxu0 0.0
        %504 = vmatpush1.msra.mxu0 %v459
        %505 = vmatprep.subr.mxu0 0.0
        %506 = vmatpush1.msra.mxu0 %v460
        %507 = vmatprep.subr.mxu0 0.0
        %508 = vmatpush1.msra.mxu0 %v461
        %509 = vmatprep.subr.mxu0 0.0
        %510 = vmatpush1.msra.mxu0 %v462
        %511 = vmatprep.subr.mxu0 0.0
        %512 = vmatpush1.msra.mxu0 %v463
        %513 = vmatprep.subr.mxu0 0.0
        %514 = vmatpush1.msra.mxu0 %v464
        %515 = vmatprep.subr.mxu0 0.0
        %516 = vmatpush1.msra.mxu0 %v465
        %517 = vmatprep.subr.mxu0 0.0
        %518 = vmatpush1.msra.mxu0 %v466
        %519 = vmatprep.subr.mxu0 0.0
        %520 = vmatpush1.msra.mxu0 %v467
        %521 = vmatprep.subr.mxu0 0.0
        %522 = vmatpush1.msra.mxu0 %v468
        %523 = vmatprep.subr.mxu0 0.0
        %524 = vmatpush1.msra.mxu0 %v469
        %525 = vmatprep.subr.mxu0 0.0
        %526 = vmatpush1.msra.mxu0 %v470
        %527 = vmatprep.subr.mxu0 0.0
        %528 = vmatpush1.msra.mxu0 %v471
        %529 = vmatprep.subr.mxu0 0.0
        %530 = vmatpush1.msra.mxu0 %v472
        %531 = vmatprep.subr.mxu0 0.0
        %532 = vmatpush1.msra.mxu0 %v473
        %533 = vmatprep.subr.mxu0 0.0
        %534 = vmatpush1.msra.mxu0 %v474
        %535 = vmatprep.subr.mxu0 0.0
        %536 = vmatpush1.msra.mxu0 %v475
        %537 = vmatprep.subr.mxu0 0.0
        %538 = vmatpush1.msra.mxu0 %v476
        %539 = vmatprep.subr.mxu0 0.0
        %540 = vmatpush1.msra.mxu0 %v477
        %541 = vmatprep.subr.mxu0 0.0
        %542 = vmatpush1.msra.mxu0 %v478
        %543 = vmatprep.subr.mxu0 0.0
        %544 = vmatpush1.msra.mxu0 %v479
        %545 = vmatprep.subr.mxu0 0.0
        %546 = vmatpush1.msra.mxu0 %v480
        %547 = vmatprep.subr.mxu0 0.0
        %548 = vmatpush1.msra.mxu0 %v481
        %549 = vmatprep.subr.mxu0 0.0
        %550 = vmatpush1.msra.mxu0 %v482
        %551 = vmatprep.subr.mxu0 0.0
        %552 = vmatpush1.msra.mxu0 %v483
        %553 = vmatprep.subr.mxu0 0.0
        %554 = vmatpush1.msra.mxu0 %v484
        %555 = vmatprep.subr.mxu0 0.0
        %556 = vmatpush1.msra.mxu0 %v485
        %557 = vmatprep.subr.mxu0 0.0
        %558 = vmatpush1.msra.mxu0 %v486
        %559 = vmatprep.subr.mxu0 0.0
        %560 = vmatpush1.msra.mxu0 %v487
        %561 = vmatprep.subr.mxu0 0.0
        %562 = vmatpush1.msra.mxu0 %v488
        %563 = vmatprep.subr.mxu0 0.0
        %564 = vmatpush1.msra.mxu0 %v489
        %565 = vmatprep.subr.mxu0 0.0
        %566 = vmatpush1.msra.mxu0 %v490
        %567 = vmatprep.mubr.f32.mxu0 %v451
        %568 = vmatmul.mubr.f32.gmra.mrb[0].mxu0 %v449
        %v569 = vpop.f32.mrb[0].mxu0
        %v570 = vadd.f32 %v496, %v569
        %v571 = vpop.f32.mrb[0].mxu0
        %572 = vmatprep.mubr.f32.mxu0 %v457
        %573 = vmatmul.mubr.f32.gmra.mrb[0].mxu0 %v455
        %v574 = vpop.f32.mrb[0].mxu0
        %v575 = vadd.f32 %v501, %v574
        %v576 = vpop.f32.mrb[0].mxu0
        %577 = vdwg.mxu0
        %578 = vst [vmem:[%s255] sm:$0xff] %v570
        %579 = vst [vmem:[%s255 + $0x8] sm:$0xff] %v575
        %s580 = sand.u32 %s133, 1
        %s581 = scalar_lea.sflag [#allocation8], %s580
        %s582 = sand.u32 %s133, 1
        %s583 = smul.addr %s582, 16
        %s584 = scalar_lea.vmem [#allocation11], %s583
        // Predicated region
        $region45: #{tpu_custom_call.1} parent=35 // pred_check
          %p585 = pneg %p143
        $region46: #{tpu_custom_call.1} parent=35 // pred_check_branch
          %587 = sbr.rel (%p585) target = $region48
        $region47: #{tpu_custom_call.1} parent=35 // pred_region
          %s589 = ssub.s32 256, 256
          %590 = vsyncadd %s581, %s589
          %s591 = smul.addr %s29, 2
          %s592 = smul.addr %s591, 128
          %s593 = scalar_lea.hbm %s5, %s592
          %s594 = sshll.u32 %s584, 4
          %s595 = int_to_ptr.vmem [resolvable:$true] %s594
          %600 = dma.vmem_to_hbm [thread:$0]  %s595, 256, %s593, %s581, 128, 128, 8
        $region48: #{tpu_custom_call.1} parent=35 // pred_fallthru
          _
      $region36: #{tpu_custom_call.1} parent=5 // pred_fallthru
        _
      %p601 = scmp.le.s32.totalorder 2, %s24
      // Predicated region
      $region49: #{tpu_custom_call.1} parent=5 // pred_check
        %p602 = pneg %p601
      $region50: #{tpu_custom_call.1} parent=5 // pred_check_branch
        %604 = sbr.rel (%p602) target = $region52
      $region51: #{tpu_custom_call.1} parent=5 // pred_region
        %s605 = ssub.s32 %s24, 2
        // Predicated region
        $region53: #{tpu_custom_call.1} parent=51 // pred_check
          %p606 = pneg %p149
        $region54: #{tpu_custom_call.1} parent=51 // pred_check_branch
          %608 = sbr.rel (%p606) target = $region56
        $region55: #{tpu_custom_call.1} parent=51 // pred_region
          %s609 = sand.u32 %s134, 1
          %s610 = scalar_lea.sflag [#allocation8], %s609
          %s611 = sand.u32 %s134, 1
          %s612 = smul.addr %s611, 16
          %s613 = scalar_lea.vmem [#allocation11], %s612
          %614 = dma.done %s610, 256
        $region56: #{tpu_custom_call.1} parent=51 // pred_fallthru
          _
      $region52: #{tpu_custom_call.1} parent=5 // pred_fallthru
        _
    $region6: #{tpu_custom_call.1} parent=1 // loop_footer
      %s28 = sadd.s32 1, %s24
    $region7: #{tpu_custom_call.1} parent=1 // loop_footer_branch
      %23 = sbr.rel target = $region3
    $region8: #{tpu_custom_call.1} parent=1 // loop_exit
      _
    %615 = vsyncpa [#allocation7], 1
    %s616 = scalar_lea.sflag [#allocation7], 1
    %617 = vsyncpa %s616, 1
    %618 = vsyncpa [#allocation10], 1
    %619 = vsyncpa [#allocation8], 1
    %s620 = scalar_lea.sflag [#allocation8], 1
    %621 = vsyncpa %s620, 1

</llo_original>
